<compile_context>
chip_gen: v6e
topology: v6e:2x2x1
jax: 0.10.0
libtpu: 0.0.40
codegen_flags: <defaults>
</compile_context>

<pallas_src>
import jax
import jax.numpy as jnp
import numpy as np
from jax import lax
from jax.experimental import pallas as pl
from jax.experimental.pallas import tpu as pltpu


LN_EPS = 1e-12


def _round_up(x, m):
    return (x + m - 1) // m * m


def _pick_tile(s):
    """Largest multiple of 8 (<= 256) that minimizes sequence padding."""
    best_tq, best_pad = 8, (-s) % 8
    for cand in range(8, 257, 8):
        pad = (-s) % cand
        if pad < best_pad or (pad == best_pad and cand > best_tq):
            best_tq, best_pad = cand, pad
    return best_tq


def _make_kernel(tq, s_pad, hidden):
    inv_h = 1.0 / hidden  # static -> folded at trace time

    def kernel(ids_ref, tok_ref, pos_ref, gamma_ref, beta_ref, out_ref,
               tok_buf, sems):
        # ids_ref  : (B * s_pad,) int32 in SMEM (scalar prefetch, flat ids).
        # tok_ref  : (V, H) token table; HBM ref (pl.ANY) or VMEM-resident blk.
        # pos_ref  : (TQ, H) position rows for this sequence tile.
        # gamma_ref, beta_ref : (1, H) LayerNorm affine params (resident).
        # out_ref  : (1, TQ, H) output tile.
        # tok_buf  : (2, TQ, H) double-buffered gathered token rows.
        # sems     : (2,) DMA semaphores, one per slot (shared by the TQ rows).
        st = pl.program_id(0)           # sequence-tile index (outer, parallel)
        b = pl.program_id(1)            # batch index (inner, carries the pipe)
        nb = pl.num_programs(1)
        slot = b % 2

        def issue_gather(target_b, target_slot):
            base = target_b * s_pad + st * tq
            @pl.loop(0, tq)
            def _(r):
                tid = ids_ref[base + r]
                pltpu.make_async_copy(
                    tok_ref.at[tid], tok_buf.at[target_slot, r],
                    sems.at[target_slot]).start()

        # Prime the pipeline at the start of each batch row.
        @pl.when(b == 0)
        def _():
            issue_gather(0, 0)

        # Prefetch the next batch step's rows into the other slot; these DMAs
        # overlap the wait + LayerNorm + writeback below.
        @pl.when(b + 1 < nb)
        def _():
            issue_gather(b + 1, 1 - slot)

        # One aggregate wait covering all TQ row copies of the current slot
        # (DMA semaphores count bytes; every row copy targets the same sem).
        pltpu.make_async_copy(tok_buf.at[slot], tok_buf.at[slot],
                              sems.at[slot]).wait()

        x = tok_buf[slot].astype(jnp.float32) + pos_ref[...].astype(jnp.float32)
        # Fused one-pass LayerNorm statistics; gamma folded into rsqrt factor.
        mean = jnp.sum(x, axis=-1, keepdims=True) * inv_h
        ex2 = jnp.sum(x * x, axis=-1, keepdims=True) * inv_h
        var = ex2 - mean * mean
        inv = lax.rsqrt(var + LN_EPS)
        y = (x - mean) * (inv * gamma_ref[...]) + beta_ref[...]
        # Dropout: identity (inference / eval mode).
        out_ref[...] = y.reshape(out_ref.shape).astype(out_ref.dtype)

    return kernel


def embeddings_forward(input_ids, tok_table, pos_table, ln_gamma, ln_beta,
                       *, tq=None, vmem_table=None):
    B, S = input_ids.shape
    V, H = tok_table.shape
    P = pos_table.shape[0]
    assert S <= P, "sequence length exceeds max_position_embeddings"

    if tq is None:
        tq = _pick_tile(S)
    tq = max(8, _round_up(tq, 8))
    s_pad = _round_up(S, tq)
    n_tiles = s_pad // tq

    tok_bytes = V * H * tok_table.dtype.itemsize
    work_bytes = (2 * tq * H * tok_table.dtype.itemsize      # gather scratch
                  + 2 * tq * H * pos_table.dtype.itemsize    # pos double buf
                  + 2 * tq * H * 4                           # f32 out dbl buf
                  + 4 * H * 4)                               # gamma/beta
    if vmem_table is None:
        # Auto: keep the table VMEM-resident only under a v7x-safe (64 MiB/TC)
        # budget, counting a conservative 2x for the input block buffers.
        # v5e/v6e (128 MiB VMEM) users with larger tables can force
        # vmem_table=True.
        vmem_table = (2 * tok_bytes + work_bytes) <= (40 << 20)

    # Clamp ids so a bad token id cannot cause a silent OOB DMA, pad the
    # sequence dim, and flatten for SMEM (1-D packs tighter).
    ids = jnp.clip(input_ids.astype(jnp.int32), 0, V - 1)
    if s_pad > S:
        ids = jnp.pad(ids, ((0, 0), (0, s_pad - S)))
    ids_flat = ids.reshape(B * s_pad)

    # Position rows for positions [0, s_pad): direct slice (zero-pad only if
    # the padded length exceeds max_position_embeddings).
    if s_pad <= P:
        pos_used = pos_table[:s_pad]
    else:
        pos_used = jnp.pad(pos_table, ((0, s_pad - P), (0, 0)))

    gamma2d = ln_gamma.reshape(1, H).astype(jnp.float32)
    beta2d = ln_beta.reshape(1, H).astype(jnp.float32)

    if vmem_table:
        # Whole table resident in VMEM (constant index map); gathers become
        # local VMEM->VMEM row copies.
        tok_spec = pl.BlockSpec((V, H), lambda st, b, ids: (0, 0))
        vmem_limit = min(max(int(2 * tok_bytes + work_bytes) + (4 << 20),
                             32 << 20), 120 << 20)
    else:
        # Table stays in HBM; rows gathered by manual (double-buffered) DMA.
        tok_spec = pl.BlockSpec(memory_space=pl.ANY)
        vmem_limit = None

    grid_spec = pltpu.PrefetchScalarGridSpec(
        num_scalar_prefetch=1,
        grid=(n_tiles, B),        # seq-tile outer, batch inner -> pos reuse
        in_specs=[
            tok_spec,
            pl.BlockSpec((tq, H), lambda st, b, ids: (st, 0)),
            pl.BlockSpec((1, H), lambda st, b, ids: (0, 0)),
            pl.BlockSpec((1, H), lambda st, b, ids: (0, 0)),
        ],
        out_specs=pl.BlockSpec((1, tq, H), lambda st, b, ids: (b, st, 0)),
        scratch_shapes=[
            pltpu.VMEM((2, tq, H), tok_table.dtype),
            pltpu.SemaphoreType.DMA((2,)),
        ],
    )

    out_pad = pl.pallas_call(
        _make_kernel(tq, s_pad, H),
        out_shape=jax.ShapeDtypeStruct((B, s_pad, H), jnp.float32),
        grid_spec=grid_spec,
        compiler_params=pltpu.CompilerParams(
            # Outer (seq-tile) axis is carry-free -> parallel (megacore on
            # v7x); inner batch axis carries the double-buffer -> arbitrary.
            dimension_semantics=("parallel", "arbitrary"),
            vmem_limit_bytes=vmem_limit,
        ),
    )(ids_flat, tok_table, pos_used, gamma2d, beta2d)

    if s_pad == S:
        return out_pad
    return out_pad[:, :S, :]


def embeddings_reference(input_ids, tok_table, pos_table, ln_gamma, ln_beta):
    """Pure-JAX reference matching the PyTorch forward (eval mode)."""
    S = input_ids.shape[1]
    tok = jnp.take(tok_table, input_ids, axis=0)            # (B, S, H)
    pos = pos_table[jnp.arange(S)][None, :, :]               # (1, S, H)
    x = tok + pos
    mean = jnp.mean(x, axis=-1, keepdims=True)
    var = jnp.mean((x - mean) ** 2, axis=-1, keepdims=True)
    return (x - mean) / jnp.sqrt(var + LN_EPS) * ln_gamma + ln_beta


if __name__ == "__main__":
    # Small synthetic config (mirrors the module's __init__ shapes).
    vocab_size = 100
    max_position_embeddings = 16
    hidden_size = 128

    key = jax.random.PRNGKey(0)
    k_tok, k_pos, k_ids = jax.random.split(key, 3)

    # torch.nn.Embedding init ~ N(0, 1); LayerNorm: gamma=1, beta=0.
    tok_table = jax.random.normal(k_tok, (vocab_size, hidden_size),
                                  dtype=jnp.float32)
    pos_table = jax.random.normal(k_pos, (max_position_embeddings, hidden_size),
                                  dtype=jnp.float32)
    ln_gamma = jnp.ones((hidden_size,), dtype=jnp.float32)
    ln_beta = jnp.zeros((hidden_size,), dtype=jnp.float32)

    # Exercise both the HBM-gather path and the VMEM-resident-table path,
    # with and without sequence padding.
    for (batch, seq) in [(2, 8), (3, 13)]:
        ids = jax.random.randint(jax.random.fold_in(k_ids, seq),
                                 (batch, seq), 0, vocab_size, dtype=jnp.int32)
        ref = embeddings_reference(ids, tok_table, pos_table, ln_gamma, ln_beta)
        for use_vmem_table in (False, True):
            out = embeddings_forward(ids, tok_table, pos_table, ln_gamma,
                                     ln_beta, vmem_table=use_vmem_table)
            out = jax.block_until_ready(out)
            np.testing.assert_allclose(np.asarray(out), np.asarray(ref),
                                       rtol=1e-5, atol=1e-4)

    print("KERNEL_OK")
</pallas_src>

<mosaic_0001>
module attributes {stable_mosaic.version = 11 : i64} {
  func.func @kernel(%arg0: i32, %arg1: i32, %arg2: memref<16xi32, #tpu.memory_space<smem>>, %arg3: memref<100x128xf32, #tpu.memory_space<any>>, %arg4: memref<8x128xf32, #tpu.memory_space<vmem>>, %arg5: memref<1x128xf32, #tpu.memory_space<vmem>>, %arg6: memref<1x128xf32, #tpu.memory_space<vmem>>, %arg7: memref<1x8x128xf32, #tpu.memory_space<vmem>>, %arg8: memref<2x8x128xf32, #tpu.memory_space<vmem>>, %arg9: memref<2x!tpu.dma_semaphore, #tpu.memory_space<semaphore_mem>>) attributes {dimension_semantics = [#tpu.dimension_semantics<parallel>, #tpu.dimension_semantics<arbitrary>], iteration_bounds = array<i64: 1, 2>, scalar_prefetch = 1 : i64, scratch_operands = 2 : i64, tpu.core_type = #tpu.core_type<tc>, window_params = [{}, {transform_indices = @transform_1, window_bounds = array<i64: 8, 128>}, {pipeline_mode = #tpu.pipeline_mode<synchronous>, transform_indices = @transform_2, window_bounds = array<i64: 1, 128>}, {pipeline_mode = #tpu.pipeline_mode<synchronous>, transform_indices = @transform_3, window_bounds = array<i64: 1, 128>}, {transform_indices = @transform_4, window_bounds = array<i64: 1, 8, 128>}]} {
    %c2_i32 = arith.constant 2 : i32
    %c0_i32 = arith.constant 0 : i32
    %0 = arith.cmpi eq, %c2_i32, %c0_i32 : i32
    %c1_i32 = arith.constant 1 : i32
    %1 = arith.select %0, %c1_i32, %c2_i32 : i32
    %2 = arith.remsi %arg1, %1 : i32
    %c0_i32_0 = arith.constant 0 : i32
    %3 = arith.cmpi ne, %2, %c0_i32_0 : i32
    %c0_i32_1 = arith.constant 0 : i32
    %4 = arith.cmpi slt, %2, %c0_i32_1 : i32
    %c0_i32_2 = arith.constant 0 : i32
    %5 = arith.cmpi slt, %1, %c0_i32_2 : i32
    %6 = arith.xori %4, %5 : i1
    %7 = arith.andi %6, %3 : i1
    %8 = arith.addi %2, %1 : i32
    %9 = arith.select %7, %8, %2 : i32
    %c0_i32_3 = arith.constant 0 : i32
    %10 = arith.cmpi eq, %arg1, %c0_i32_3 : i32
    %11 = arith.extui %10 : i1 to i32
    %c0_i32_4 = arith.constant 0 : i32
    %12 = arith.cmpi ne, %11, %c0_i32_4 : i32
    scf.if %12 {
      %c8_i32 = arith.constant 8 : i32
      %54 = arith.muli %arg0, %c8_i32 : i32
      %c0_i32_26 = arith.constant 0 : i32
      %55 = arith.addi %c0_i32_26, %54 : i32
      %c0_i32_27 = arith.constant 0 : i32
      %c8_i32_28 = arith.constant 8 : i32
      %56 = arith.addi %c0_i32_27, %c8_i32_28 : i32
      %c1_i32_29 = arith.constant 1 : i32
      scf.for %arg10 = %c0_i32_27 to %56 step %c1_i32_29  : i32 {
        %c1_i32_31 = arith.constant 1 : i32
        %57 = arith.muli %arg10, %c1_i32_31 : i32
        %c0_i32_32 = arith.constant 0 : i32
        %58 = arith.addi %c0_i32_32, %57 : i32
        %59 = arith.addi %55, %58 : i32
        %60 = arith.index_cast %59 : i32 to index
        %61 = memref.load %arg2[%60] : memref<16xi32, #tpu.memory_space<smem>>
        %c0_i32_33 = arith.constant 0 : i32
        %c0_i32_34 = arith.constant 0 : i32
        %c0_i32_35 = arith.constant 0 : i32
        %62 = tpu.memref_slice %arg3[%61, %c0_i32_35] : memref<100x128xf32, #tpu.memory_space<any>> -> memref<1x128xf32, #tpu.memory_space<any>>
        %63 = tpu.memref_squeeze %62 : memref<1x128xf32, #tpu.memory_space<any>> -> memref<128xf32, #tpu.memory_space<any>>
        %c0_i32_36 = arith.constant 0 : i32
        %64 = tpu.memref_slice %arg8[%c0_i32_33, %58, %c0_i32_36] : memref<2x8x128xf32, #tpu.memory_space<vmem>> -> memref<1x1x128xf32, #tpu.memory_space<vmem>>
        %65 = tpu.memref_squeeze %64 : memref<1x1x128xf32, #tpu.memory_space<vmem>> -> memref<128xf32, #tpu.memory_space<vmem>>
        %66 = tpu.memref_slice %arg9[%c0_i32_34] : memref<2x!tpu.dma_semaphore, #tpu.memory_space<semaphore_mem>> -> memref<1x!tpu.dma_semaphore, #tpu.memory_space<semaphore_mem>>
        %67 = tpu.memref_squeeze %66 : memref<1x!tpu.dma_semaphore, #tpu.memory_space<semaphore_mem>> -> memref<!tpu.dma_semaphore, #tpu.memory_space<semaphore_mem>>
        tpu.enqueue_dma source(%63 : memref<128xf32, #tpu.memory_space<any>>) target(%65 : memref<128xf32, #tpu.memory_space<vmem>>) target_semaphore(%67 : memref<!tpu.dma_semaphore, #tpu.memory_space<semaphore_mem>>)
      }
      %c8_i32_30 = arith.constant 8 : i32
    } else {
    }
    %c1_i32_5 = arith.constant 1 : i32
    %13 = arith.addi %arg1, %c1_i32_5 : i32
    %c2_i32_6 = arith.constant 2 : i32
    %14 = arith.cmpi slt, %13, %c2_i32_6 : i32
    %15 = arith.extui %14 : i1 to i32
    %c0_i32_7 = arith.constant 0 : i32
    %16 = arith.cmpi ne, %15, %c0_i32_7 : i32
    scf.if %16 {
      %c1_i32_26 = arith.constant 1 : i32
      %54 = arith.addi %arg1, %c1_i32_26 : i32
      %c1_i32_27 = arith.constant 1 : i32
      %55 = arith.subi %c1_i32_27, %9 : i32
      %c8_i32 = arith.constant 8 : i32
      %56 = arith.muli %54, %c8_i32 : i32
      %c8_i32_28 = arith.constant 8 : i32
      %57 = arith.muli %arg0, %c8_i32_28 : i32
      %58 = arith.addi %56, %57 : i32
      %c0_i32_29 = arith.constant 0 : i32
      %c8_i32_30 = arith.constant 8 : i32
      %59 = arith.addi %c0_i32_29, %c8_i32_30 : i32
      %c1_i32_31 = arith.constant 1 : i32
      scf.for %arg10 = %c0_i32_29 to %59 step %c1_i32_31  : i32 {
        %c1_i32_33 = arith.constant 1 : i32
        %60 = arith.muli %arg10, %c1_i32_33 : i32
        %c0_i32_34 = arith.constant 0 : i32
        %61 = arith.addi %c0_i32_34, %60 : i32
        %62 = arith.addi %58, %61 : i32
        %63 = arith.index_cast %62 : i32 to index
        %64 = memref.load %arg2[%63] : memref<16xi32, #tpu.memory_space<smem>>
        %c0_i32_35 = arith.constant 0 : i32
        %65 = tpu.memref_slice %arg3[%64, %c0_i32_35] : memref<100x128xf32, #tpu.memory_space<any>> -> memref<1x128xf32, #tpu.memory_space<any>>
        %66 = tpu.memref_squeeze %65 : memref<1x128xf32, #tpu.memory_space<any>> -> memref<128xf32, #tpu.memory_space<any>>
        %c0_i32_36 = arith.constant 0 : i32
        %67 = tpu.memref_slice %arg8[%55, %61, %c0_i32_36] : memref<2x8x128xf32, #tpu.memory_space<vmem>> -> memref<1x1x128xf32, #tpu.memory_space<vmem>>
        %68 = tpu.memref_squeeze %67 : memref<1x1x128xf32, #tpu.memory_space<vmem>> -> memref<128xf32, #tpu.memory_space<vmem>>
        %69 = tpu.memref_slice %arg9[%55] : memref<2x!tpu.dma_semaphore, #tpu.memory_space<semaphore_mem>> -> memref<1x!tpu.dma_semaphore, #tpu.memory_space<semaphore_mem>>
        %70 = tpu.memref_squeeze %69 : memref<1x!tpu.dma_semaphore, #tpu.memory_space<semaphore_mem>> -> memref<!tpu.dma_semaphore, #tpu.memory_space<semaphore_mem>>
        tpu.enqueue_dma source(%66 : memref<128xf32, #tpu.memory_space<any>>) target(%68 : memref<128xf32, #tpu.memory_space<vmem>>) target_semaphore(%70 : memref<!tpu.dma_semaphore, #tpu.memory_space<semaphore_mem>>)
      }
      %c8_i32_32 = arith.constant 8 : i32
    } else {
    }
    %c0_i32_8 = arith.constant 0 : i32
    %c0_i32_9 = arith.constant 0 : i32
    %17 = tpu.memref_slice %arg8[%9, %c0_i32_8, %c0_i32_9] : memref<2x8x128xf32, #tpu.memory_space<vmem>> -> memref<1x8x128xf32, #tpu.memory_space<vmem>>
    %18 = tpu.memref_squeeze %17 : memref<1x8x128xf32, #tpu.memory_space<vmem>> -> memref<8x128xf32, #tpu.memory_space<vmem>>
    %c0_i32_10 = arith.constant 0 : i32
    %c0_i32_11 = arith.constant 0 : i32
    %19 = tpu.memref_slice %arg8[%9, %c0_i32_10, %c0_i32_11] : memref<2x8x128xf32, #tpu.memory_space<vmem>> -> memref<1x8x128xf32, #tpu.memory_space<vmem>>
    %20 = tpu.memref_squeeze %19 : memref<1x8x128xf32, #tpu.memory_space<vmem>> -> memref<8x128xf32, #tpu.memory_space<vmem>>
    %21 = tpu.memref_slice %arg9[%9] : memref<2x!tpu.dma_semaphore, #tpu.memory_space<semaphore_mem>> -> memref<1x!tpu.dma_semaphore, #tpu.memory_space<semaphore_mem>>
    %22 = tpu.memref_squeeze %21 : memref<1x!tpu.dma_semaphore, #tpu.memory_space<semaphore_mem>> -> memref<!tpu.dma_semaphore, #tpu.memory_space<semaphore_mem>>
    tpu.wait_dma2 semaphore(%22 : memref<!tpu.dma_semaphore, #tpu.memory_space<semaphore_mem>>) src(%18 : memref<8x128xf32, #tpu.memory_space<vmem>>) dst(%20 : memref<8x128xf32, #tpu.memory_space<vmem>>)
    %23 = arith.index_cast %9 : i32 to index
    %c0 = arith.constant 0 : index
    %c0_12 = arith.constant 0 : index
    %24 = vector.load %arg8[%23, %c0, %c0_12] : memref<2x8x128xf32, #tpu.memory_space<vmem>>, vector<1x8x128xf32>
    %25 = vector.shape_cast %24 : vector<1x8x128xf32> to vector<8x128xf32>
    %c0_13 = arith.constant 0 : index
    %c0_14 = arith.constant 0 : index
    %26 = vector.load %arg4[%c0_13, %c0_14] : memref<8x128xf32, #tpu.memory_space<vmem>>, vector<8x128xf32>
    %27 = arith.addf %25, %26 : vector<8x128xf32>
    %cst = arith.constant dense<0.000000e+00> : vector<8xf32>
    %28 = vector.multi_reduction <add>, %27, %cst [1] : vector<8x128xf32> to vector<8xf32>
    %29 = vector.shape_cast %28 : vector<8xf32> to vector<8x1xf32>
    %cst_15 = arith.constant 7.812500e-03 : f32
    %30 = vector.broadcast %cst_15 : f32 to vector<8x1xf32>
    %31 = arith.mulf %29, %30 : vector<8x1xf32>
    %32 = arith.mulf %27, %27 : vector<8x128xf32>
    %cst_16 = arith.constant dense<0.000000e+00> : vector<8xf32>
    %33 = vector.multi_reduction <add>, %32, %cst_16 [1] : vector<8x128xf32> to vector<8xf32>
    %34 = vector.shape_cast %33 : vector<8xf32> to vector<8x1xf32>
    %cst_17 = arith.constant 7.812500e-03 : f32
    %35 = vector.broadcast %cst_17 : f32 to vector<8x1xf32>
    %36 = arith.mulf %34, %35 : vector<8x1xf32>
    %37 = arith.mulf %31, %31 : vector<8x1xf32>
    %38 = arith.subf %36, %37 : vector<8x1xf32>
    %cst_18 = arith.constant 9.99999996E-13 : f32
    %39 = vector.broadcast %cst_18 : f32 to vector<8x1xf32>
    %40 = arith.addf %38, %39 : vector<8x1xf32>
    %41 = math.rsqrt %40 : vector<8x1xf32>
    %42 = vector.broadcast %31 : vector<8x1xf32> to vector<8x128xf32>
    %43 = arith.subf %27, %42 : vector<8x128xf32>
    %c0_19 = arith.constant 0 : index
    %c0_20 = arith.constant 0 : index
    %44 = vector.load %arg5[%c0_19, %c0_20] : memref<1x128xf32, #tpu.memory_space<vmem>>, vector<1x128xf32>
    %45 = vector.broadcast %41 : vector<8x1xf32> to vector<8x128xf32>
    %46 = vector.broadcast %44 : vector<1x128xf32> to vector<8x128xf32>
    %47 = arith.mulf %45, %46 : vector<8x128xf32>
    %48 = arith.mulf %43, %47 : vector<8x128xf32>
    %c0_21 = arith.constant 0 : index
    %c0_22 = arith.constant 0 : index
    %49 = vector.load %arg6[%c0_21, %c0_22] : memref<1x128xf32, #tpu.memory_space<vmem>>, vector<1x128xf32>
    %50 = vector.broadcast %49 : vector<1x128xf32> to vector<8x128xf32>
    %51 = arith.addf %48, %50 : vector<8x128xf32>
    %52 = vector.shape_cast %51 : vector<8x128xf32> to vector<1x8x128xf32>
    %c0_23 = arith.constant 0 : index
    %c0_24 = arith.constant 0 : index
    %c0_25 = arith.constant 0 : index
    %53 = vector.load %arg7[%c0_23, %c0_24, %c0_25] : memref<1x8x128xf32, #tpu.memory_space<vmem>>, vector<1x8x128xf32>
    tpu.vector_store %arg7[%c0_23, %c0_24, %c0_25], %52 {strides = array<i32>} : memref<1x8x128xf32, #tpu.memory_space<vmem>>, vector<1x8x128xf32>,
    return
  }
  func.func @transform_1(%arg0: i32, %arg1: i32, %arg2: memref<16xi32, #tpu.memory_space<smem>>) -> (i32, i32) {
    %c0_i32 = arith.constant 0 : i32
    %c0_i32_0 = arith.constant 0 : i32
    return %arg0, %c0_i32 : i32, i32
  }
  func.func @transform_2(%arg0: i32, %arg1: i32, %arg2: memref<16xi32, #tpu.memory_space<smem>>) -> (i32, i32) {
    %c0_i32 = arith.constant 0 : i32
    %c0_i32_0 = arith.constant 0 : i32
    %c0_i32_1 = arith.constant 0 : i32
    return %c0_i32, %c0_i32_0 : i32, i32
  }
  func.func @transform_3(%arg0: i32, %arg1: i32, %arg2: memref<16xi32, #tpu.memory_space<smem>>) -> (i32, i32) {
    %c0_i32 = arith.constant 0 : i32
    %c0_i32_0 = arith.constant 0 : i32
    %c0_i32_1 = arith.constant 0 : i32
    return %c0_i32, %c0_i32_0 : i32, i32
  }
  func.func @transform_4(%arg0: i32, %arg1: i32, %arg2: memref<16xi32, #tpu.memory_space<smem>>) -> (i32, i32, i32) {
    %c0_i32 = arith.constant 0 : i32
    %c0_i32_0 = arith.constant 0 : i32
    return %arg1, %arg0, %c0_i32 : i32, i32, i32
  }
}

</mosaic_0001>

<llo_original>
// kernel: tpu_custom_call.1
$region0: #{tpu_custom_call.1}
  #allocation0 [shape = 'u32[]', space=smem, size = 0x4, offset = 0x4, fixed_abs, tag = 'smem constant byte address 0x4 - core index']
  #allocation1 [shape = 'u32[144,128]{1,0:T(1,128)}', space=vmem, size = 0x12000, scoped, tag = 'internal scratch']
  #allocation2 [shape = 'f32[2,8,128]{2,1,0:T(8,128)}', space=vmem, size = 0x2000, scoped, tag = 'scratch operand']
  #allocation3 [shape = 's32[2]{0}', space=sflag, size = 0x8, scoped, tag = 'scratch operand']
  #allocation4 [shape = 's32[1]{0}', space=sflag, size = 0x4, scoped, tag = 'scoped memory for tpu_custom_call.1']
  #allocation5 [shape = 'u8[512]{0}', space=smem, size = 0x200, scoped, tag = 'prefetched SMEM operand 0']
  #allocation10 [shape = 's32[]', space=sflag, size = 0x4, offset = 0, fixed_abs, tag = 'sflag constant byte address 0x0 - dummy sync flag']
  #allocation11 [shape = 's32[]', space=sflag, size = 0x4, offset = 0, fixed_abs, tag = 'sflag constant byte address 0x0 - dummy sync flag']
  #allocation12 [shape = 'u32[]', space=smem, size = 0x4, offset = 0x44, fixed_abs, tag = 'smem constant byte address 0x44 - assertion arg 0']
  #allocation13 [shape = 'u32[]', space=smem, size = 0x4, offset = 0x48, fixed_abs, tag = 'smem constant byte address 0x48 - assertion arg 1']
  #allocation14 [shape = 's32[]', space=sflag, size = 0x4, offset = 0, fixed_abs, tag = 'sflag constant byte address 0x0 - dummy sync flag']
  #allocation15 [shape = 's32[]', space=sflag, size = 0x4, offset = 0, fixed_abs, tag = 'sflag constant byte address 0x0 - dummy sync flag']
  %s0 = inlined_call_operand.hbm [shape: s32[16], index: 0, kind: input, shape index: {}]
  %s1 = inlined_call_operand.hbm [shape: f32[100,128], index: 1, kind: input, shape index: {}]
  %s2 = inlined_call_operand.hbm [shape: f32[8,128], index: 2, kind: input, shape index: {}]
  %s3 = inlined_call_operand.vmem [shape: f32[1,128], index: 3, kind: input, shape index: {}]
  %s4 = inlined_call_operand.vmem [shape: f32[1,128], index: 4, kind: input, shape index: {}]
  %s5 = inlined_call_operand.hbm [shape: f32[2,8,128], index: 5, kind: output, shape index: {}]
  %s6 = sld [smem:[#allocation0]]
  $region79: #{tpu_custom_call.1} parent=0
    _
  %s8 = ssub.s32 1, %s6
  %s9 = scalar_select 0, %s8, %s6
  %11 = dma.hbm_to_smem %s0, 16, [#allocation5], [#allocation4]
  %12 = dma.done [#allocation4], 16
  %13 = sfence
  $region1: #{tpu_custom_call.1} parent=0
    #allocation6 [shape = 'u8[4096]{0}', space=vmem, size = 0x1000, scoped, tag = 'input window, operand 2, single buffered']
    #allocation7 [shape = 's32[2]{0}', space=sflag, size = 0x8, scoped, tag = 'scoped memory for tpu_custom_call.1']
    #allocation8 [shape = 's32[2]{0}', space=sflag, size = 0x8, scoped, tag = 'scoped memory for tpu_custom_call.1']
    #allocation9 [shape = 'u8[8192]{0}', space=vmem, size = 0x2000, scoped, tag = 'output window, operand 0']
    %14 = vsyncpa [#allocation7], 0
    %15 = vsyncpa [#allocation8], 0
    %s16 = scalar_lea.sflag [#allocation8], 1
    %17 = vsyncpa %s16, 0
    loop: start=0, step=1, limit=4
    $region2: #{tpu_custom_call.1} parent=1 // loop_pre_header
      _
    $region3: #{tpu_custom_call.1} parent=1 // loop_header
      %s19 = sphi 0, %s23
      %p20 = scmp.ge.s32.totalorder %s19, 4
      %s26 = sphi 0, %s38
      %s27 = sphi 0, %s34
      %s28 = sphi 0, %s26
      %s29 = sphi 0, %s27
      %s30 = sphi 0, %s28
      %s31 = sphi 0, %s29
      %s41 = sphi 0, %s43
      %s44 = sphi 0, %s41
      %s45 = sphi 0, %s44
      %s61 = sphi 0, %s45
      %s65 = sphi 0, %s65
      %s67 = sphi 0, %s65
      %s68 = sphi 0, %s67
      %s82 = sphi 0, %s68
      %s86 = sphi 0, %s86
      %s88 = sphi 0, %s86
      %s89 = sphi 0, %s88
      %s103 = sphi 0, %s89
      %s111 = sphi 0, %s113
      %s114 = sphi 0, %s111
      %s115 = sphi 0, %s114
      %s131 = sphi 0, %s115
    $region4: #{tpu_custom_call.1} parent=1 // loop_header_branch
      %22 = sbr.rel (%p20) target = $region8
    $region5: #{tpu_custom_call.1} parent=1 // loop_body
      %s24 = ssub.s32 %s19, 1
      %s25 = ssub.s32 %s19, 2
      %s32 = sadd.s32 1, %s27
      %p33 = scmp.ge.s32.totalorder %s32, 2
      %s34 = scalar_select %p33, 0, %s32
      %s35 = sadd.s32 1, %s26
      %s36 = scalar_select %p33, %s35, %s26
      %p37 = scmp.ge.s32.totalorder %s36, 1
      %s38 = scalar_select %p37, 0, %s36
      %s39 = ssub.s32 %s26, %s38
      %p40 = scmp.eq.s32.totalorder %s39, 0
      %s42 = sadd.s32 %s41, 1
      %s43 = scalar_select %p40, %s41, %s42
      %p46 = pneg %p40
      %p47 = scmp.eq.s32.totalorder %s19, 1
      %p48 = por %p46, %p47
      %p49 = scmp.ne.s32.totalorder %s41, %s44
      %p50 = scmp.eq.s32.totalorder %s19, 0
      %p51 = por %p49, %p50
      %p52 = scmp.ne.s32.totalorder %s41, %s44
      %p53 = scmp.eq.s32.totalorder %s24, 1
      %p54 = por %p52, %p53
      %p55 = scmp.ne.s32.totalorder %s44, %s45
      %p56 = scmp.eq.s32.totalorder %s24, 0
      %p57 = por %p55, %p56
      %p58 = scmp.ne.s32.totalorder %s44, %s45
      %p59 = scmp.eq.s32.totalorder %s25, 1
      %p60 = por %p58, %p59
      %p62 = scmp.ne.s32.totalorder %s45, %s61
      %p63 = scmp.eq.s32.totalorder %s25, 0
      %p64 = por %p62, %p63
      %s66 = sadd.s32 %s65, 1
      %p69 = scmp.eq.s32.totalorder %s19, 1
      %p70 = scmp.ne.s32.totalorder %s65, %s67
      %p71 = scmp.eq.s32.totalorder %s19, 0
      %p72 = por %p70, %p71
      %p73 = scmp.ne.s32.totalorder %s65, %s67
      %p74 = scmp.eq.s32.totalorder %s24, 1
      %p75 = por %p73, %p74
      %p76 = scmp.ne.s32.totalorder %s67, %s68
      %p77 = scmp.eq.s32.totalorder %s24, 0
      %p78 = por %p76, %p77
      %p79 = scmp.ne.s32.totalorder %s67, %s68
      %p80 = scmp.eq.s32.totalorder %s25, 1
      %p81 = por %p79, %p80
      %p83 = scmp.ne.s32.totalorder %s68, %s82
      %p84 = scmp.eq.s32.totalorder %s25, 0
      %p85 = por %p83, %p84
      %s87 = sadd.s32 %s86, 1
      %p90 = scmp.eq.s32.totalorder %s19, 1
      %p91 = scmp.ne.s32.totalorder %s86, %s88
      %p92 = scmp.eq.s32.totalorder %s19, 0
      %p93 = por %p91, %p92
      %p94 = scmp.ne.s32.totalorder %s86, %s88
      %p95 = scmp.eq.s32.totalorder %s24, 1
      %p96 = por %p94, %p95
      %p97 = scmp.ne.s32.totalorder %s88, %s89
      %p98 = scmp.eq.s32.totalorder %s24, 0
      %p99 = por %p97, %p98
      %p100 = scmp.ne.s32.totalorder %s88, %s89
      %p101 = scmp.eq.s32.totalorder %s25, 1
      %p102 = por %p100, %p101
      %p104 = scmp.ne.s32.totalorder %s89, %s103
      %p105 = scmp.eq.s32.totalorder %s25, 0
      %p106 = por %p104, %p105
      %s107 = ssub.s32 %s27, %s34
      %s108 = ssub.s32 %s26, %s38
      %s109 = sor.u32 %s107, %s108
      %p110 = scmp.eq.s32.totalorder %s109, 0
      %s112 = sadd.s32 %s111, 1
      %s113 = scalar_select %p110, %s111, %s112
      %p116 = pneg %p110
      %p117 = scmp.eq.s32.totalorder %s19, 1
      %p118 = por %p116, %p117
      %p119 = scmp.ne.s32.totalorder %s111, %s114
      %p120 = scmp.eq.s32.totalorder %s19, 0
      %p121 = por %p119, %p120
      %p122 = scmp.ne.s32.totalorder %s111, %s114
      %p123 = scmp.eq.s32.totalorder %s24, 1
      %p124 = por %p122, %p123
      %p125 = scmp.ne.s32.totalorder %s114, %s115
      %p126 = scmp.eq.s32.totalorder %s24, 0
      %p127 = por %p125, %p126
      %p128 = scmp.ne.s32.totalorder %s114, %s115
      %p129 = scmp.eq.s32.totalorder %s25, 1
      %p130 = por %p128, %p129
      %p132 = scmp.ne.s32.totalorder %s115, %s131
      %p133 = scmp.eq.s32.totalorder %s25, 0
      %p134 = por %p132, %p133
      %p135 = scmp.le.s32.totalorder 1, %s19
      %p136 = scmp.lt.s32.totalorder %s19, 3
      %p137 = pnand %p135, %p136
      %p138 = pneg %p137
      // Predicated region
      $region9: #{tpu_custom_call.1} parent=5 // pred_check
        _
      $region10: #{tpu_custom_call.1} parent=5 // pred_check_branch
        %140 = sbr.rel (%p137) target = $region12
      $region11: #{tpu_custom_call.1} parent=5 // pred_region
        %s141 = ssub.s32 %s19, 1
        // Predicated region
        $region13: #{tpu_custom_call.1} parent=11 // pred_check
          %p142 = pneg %p57
        $region14: #{tpu_custom_call.1} parent=11 // pred_check_branch
          %144 = sbr.rel (%p142) target = $region16
        $region15: #{tpu_custom_call.1} parent=11 // pred_region
          %s146 = ssub.s32 128, 128
          %147 = vsyncadd [#allocation7], %s146
          %s148 = smul.addr %s28, 128
          %s149 = scalar_lea.hbm %s2, %s148
          %s151 = sshll.u32 [#allocation6], 4
          %s152 = int_to_ptr.vmem [resolvable:$true] %s151
          %154 = dma.hbm_to_vmem [thread:$0]  %s149, 128, %s152, [#allocation7]
        $region16: #{tpu_custom_call.1} parent=11 // pred_fallthru
          _
        // Predicated region
        $region17: #{tpu_custom_call.1} parent=11 // pred_check
          %p155 = pneg %p78
        $region18: #{tpu_custom_call.1} parent=11 // pred_check_branch
          %157 = sbr.rel (%p155) target = $region20
        $region19: #{tpu_custom_call.1} parent=11 // pred_region
          _
        $region20: #{tpu_custom_call.1} parent=11 // pred_fallthru
          _
        // Predicated region
        $region21: #{tpu_custom_call.1} parent=11 // pred_check
          %p158 = pneg %p99
        $region22: #{tpu_custom_call.1} parent=11 // pred_check_branch
          %160 = sbr.rel (%p158) target = $region24
        $region23: #{tpu_custom_call.1} parent=11 // pred_region
          _
        $region24: #{tpu_custom_call.1} parent=11 // pred_fallthru
          _
      $region12: #{tpu_custom_call.1} parent=5 // pred_fallthru
        _
      %p161 = scmp.lt.s32.totalorder %s19, 2
      // Predicated region
      $region25: #{tpu_custom_call.1} parent=5 // pred_check
        %p162 = pneg %p161
      $region26: #{tpu_custom_call.1} parent=5 // pred_check_branch
        %164 = sbr.rel (%p162) target = $region28
      $region27: #{tpu_custom_call.1} parent=5 // pred_region
        _
      $region28: #{tpu_custom_call.1} parent=5 // pred_fallthru
        _
      %p165 = scmp.le.s32.totalorder 1, %s19
      %p166 = scmp.lt.s32.totalorder %s19, 3
      %p167 = pnand %p165, %p166
      %p168 = pneg %p167
      // Predicated region
      $region29: #{tpu_custom_call.1} parent=5 // pred_check
        _
      $region30: #{tpu_custom_call.1} parent=5 // pred_check_branch
        %170 = sbr.rel (%p167) target = $region32
      $region31: #{tpu_custom_call.1} parent=5 // pred_region
        %s171 = ssub.s32 %s19, 1
        // Predicated region
        $region33: #{tpu_custom_call.1} parent=31 // pred_check
          %p172 = pneg %p57
        $region34: #{tpu_custom_call.1} parent=31 // pred_check_branch
          %174 = sbr.rel (%p172) target = $region36
        $region35: #{tpu_custom_call.1} parent=31 // pred_region
          %175 = dma.done [#allocation7], 128
        $region36: #{tpu_custom_call.1} parent=31 // pred_fallthru
          _
        %p176 = pneg %p57
        %p177 = pneg %p54
        %p178 = pneg %p78
        %p179 = pneg %p75
        %p180 = pneg %p99
        %p181 = pneg %p96
        %p182 = pneg %p127
        %p183 = pneg %p124
        %s184 = sand.u32 %s114, 1
        %s185 = scalar_lea.sflag [#allocation8], %s184
        %s186 = sand.u32 %s114, 1
        %s187 = smul.addr %s186, 8
        %s188 = scalar_lea.vmem [#allocation9], %s187
        %p189 = scmp.lt.s32.totalorder %s29, 0
        %s190 = ssub.s32 0, %s29
        %s191 = scalar_select %p189, %s190, %s29
        %s192 = sand.u32 %s191, 1
        %s193 = ssub.s32 0, %s192
        %s194 = scalar_select %p189, %s193, %s192
        %p195 = scmp.ne.s32.totalorder %s194, 0
        %p196 = scmp.lt.s32.totalorder %s194, 0
        %p197 = pnand %p196, %p195
        %p198 = pneg %p197
        %s199 = sadd.s32 %s194, 2
        %s200 = scalar_select %p198, %s199, %s194
        %p201 = scmp.eq.s32.totalorder %s29, 0
        // Predicated region
        $region37: #{tpu_custom_call.1} parent=31 // pred_check
          %p202 = pneg %p201
        $region38: #{tpu_custom_call.1} parent=31 // pred_check_branch
          %204 = sbr.rel (%p202) target = $region40
        $region39: #{tpu_custom_call.1} parent=31 // pred_region
          %s205 = smul.u32 %s28, 8
          loop: start=0, step=1, limit=8
          $region41: #{tpu_custom_call.1} parent=39 // loop_pre_header
            _
          $region42: #{tpu_custom_call.1} parent=39 // loop_header
            %s207 = sphi 0, %s211
            %p208 = scmp.ge.s32.totalorder %s207, 8
          $region43: #{tpu_custom_call.1} parent=39 // loop_header_branch
            %210 = sbr.rel (%p208) target = $region47
          $region44: #{tpu_custom_call.1} parent=39 // loop_body
            %s212 = sadd.s32 %s205, %s207
            %s213 = sld [smem:[#allocation5 + %s212]]
            %s214 = smul.addr %s213, 16
            %s215 = scalar_lea.hbm %s1, %s214
            %s216 = scalar_lea.vmem [#allocation2], %s207
            // Predicated region
            $region48: #{tpu_custom_call.1} parent=44 // pred_check
              _
            $region49: #{tpu_custom_call.1} parent=44 // pred_check_branch
              %218 = sbr.rel target = $region51
            $region50: #{tpu_custom_call.1} parent=44 // pred_region
              %219 = sst [smem:[#allocation12]] [#allocation11]
              %220 = sst [smem:[#allocation13]] [#allocation10]
            $region51: #{tpu_custom_call.1} parent=44 // pred_fallthru
              _
            %222 = shalt.err (0)
            %s224 = sshll.u32 %s216, 4
            %s225 = int_to_ptr.vmem [resolvable:$true] %s224
            %227 = dma.hbm_to_vmem [thread:$0]  %s215, 16, %s225, [#allocation3]
          $region45: #{tpu_custom_call.1} parent=39 // loop_footer
            %s211 = sadd.s32 1, %s207
          $region46: #{tpu_custom_call.1} parent=39 // loop_footer_branch
            %206 = sbr.rel target = $region42
          $region47: #{tpu_custom_call.1} parent=39 // loop_exit
            _
        $region40: #{tpu_custom_call.1} parent=31 // pred_fallthru
          _
        %s228 = sadd.s32 %s29, 1
        %p229 = scmp.lt.s32.totalorder %s228, 2
        // Predicated region
        $region52: #{tpu_custom_call.1} parent=31 // pred_check
          %p230 = pneg %p229
        $region53: #{tpu_custom_call.1} parent=31 // pred_check_branch
          %232 = sbr.rel (%p230) target = $region55
        $region54: #{tpu_custom_call.1} parent=31 // pred_region
          %s233 = ssub.s32 1, %s200
          %s234 = smul.u32 %s228, 8
          %s235 = smul.u32 %s28, 8
          %s236 = sadd.s32 %s234, %s235
          loop: start=0, step=1, limit=8
          $region56: #{tpu_custom_call.1} parent=54 // loop_pre_header
            _
          $region57: #{tpu_custom_call.1} parent=54 // loop_header
            %s238 = sphi 0, %s242
            %p239 = scmp.ge.s32.totalorder %s238, 8
          $region58: #{tpu_custom_call.1} parent=54 // loop_header_branch
            %241 = sbr.rel (%p239) target = $region62
          $region59: #{tpu_custom_call.1} parent=54 // loop_body
            %s243 = sadd.s32 %s236, %s238
            %s244 = sld [smem:[#allocation5 + %s243]]
            %s245 = smul.addr %s244, 16
            %s246 = scalar_lea.hbm %s1, %s245
            %s247 = smul.u32 %s233, 8
            %s248 = sadd.s32 %s238, %s247
            %s249 = scalar_lea.vmem [#allocation2], %s248
            %s250 = scalar_lea.sflag [#allocation3], %s233
            // Predicated region
            $region63: #{tpu_custom_call.1} parent=59 // pred_check
              _
            $region64: #{tpu_custom_call.1} parent=59 // pred_check_branch
              %252 = sbr.rel target = $region66
            $region65: #{tpu_custom_call.1} parent=59 // pred_region
              %253 = sst [smem:[#allocation12]] [#allocation15]
              %254 = sst [smem:[#allocation13]] [#allocation14]
            $region66: #{tpu_custom_call.1} parent=59 // pred_fallthru
              _
            %256 = shalt.err (0)
            %s258 = sshll.u32 %s249, 4
            %s259 = int_to_ptr.vmem [resolvable:$true] %s258
            %261 = dma.hbm_to_vmem [thread:$0]  %s246, 16, %s259, %s250
          $region60: #{tpu_custom_call.1} parent=54 // loop_footer
            %s242 = sadd.s32 1, %s238
          $region61: #{tpu_custom_call.1} parent=54 // loop_footer_branch
            %237 = sbr.rel target = $region57
          $region62: #{tpu_custom_call.1} parent=54 // loop_exit
            _
        $region55: #{tpu_custom_call.1} parent=31 // pred_fallthru
          _
        %s262 = smul.u32 %s200, 8
        %s263 = scalar_lea.vmem [#allocation2], %s262
        %s264 = scalar_lea.sflag [#allocation3], %s200
        %s265 = smul.u32 8, 1
        %s266 = sshll.u32 %s265, 4
        %267 = dma.done %s264, %s266
        %v268 = vld [vmem:[%s263] sm:$0xff]
        %v269 = vld [vmem:[#allocation6] sm:$0xff]
        %v270 = vadd.f32 %v268, %v269
        %271 = vadd.xlane.f32.xlu0 %v270
        %v272 = vpop.xlane.xlu0 %271
        %v273 = vmul.f32 %v272, 0.0078125
        %v274 = vmul.f32 %v270, %v270
        %275 = vadd.xlane.f32.xlu0 %v274
        %v276 = vpop.xlane.xlu0 %275
        %v277 = vmul.f32 %v276, 0.0078125
        %v278 = vmul.f32 %v273, %v273
        %v279 = vsub.f32 %v277, %v278
        %v280 = vadd.f32 %v279, 1e-12
        %v281 = vrsqrt.pop %v280
        %v282 = vsub.f32 %v270, %v273
        %v283 = vld [vmem:[%s3] sm:$0x1]
        %v285 = vlaneseq
        %v286 = vshrl.u32 %v285, 7
        %v287 = vsub.s32 0, %v286
        %v288 = vrot.slane %v283, %v287
        %v290 = vmul.f32 %v281, %v288
        %v291 = vmul.f32 %v282, %v290
        %v292 = vld [vmem:[%s4] sm:$0x1]
        %v294 = vlaneseq
        %v295 = vshrl.u32 %v294, 7
        %v296 = vsub.s32 0, %v295
        %v297 = vrot.slane %v292, %v296
        %v299 = vadd.f32 %v291, %v297
        %300 = vst [vmem:[%s188] sm:$0xff] %v299
        %s301 = sand.u32 %s114, 1
        %s302 = scalar_lea.sflag [#allocation8], %s301
        %s303 = sand.u32 %s114, 1
        %s304 = smul.addr %s303, 8
        %s305 = scalar_lea.vmem [#allocation9], %s304
        // Predicated region
        $region67: #{tpu_custom_call.1} parent=31 // pred_check
          %p306 = pneg %p124
        $region68: #{tpu_custom_call.1} parent=31 // pred_check_branch
          %308 = sbr.rel (%p306) target = $region70
        $region69: #{tpu_custom_call.1} parent=31 // pred_region
          %s310 = ssub.s32 128, 128
          %311 = vsyncadd %s302, %s310
          %s312 = sadd.s32 %s28, %s29
          %s313 = smul.addr %s312, 128
          %s314 = scalar_lea.hbm %s5, %s313
          %s316 = sshll.u32 %s305, 4
          %s317 = int_to_ptr.vmem [resolvable:$true] %s316
          %319 = dma.vmem_to_hbm [thread:$0]  %s317, 128, %s314, %s302
        $region70: #{tpu_custom_call.1} parent=31 // pred_fallthru
          _
      $region32: #{tpu_custom_call.1} parent=5 // pred_fallthru
        _
      %p320 = scmp.le.s32.totalorder 2, %s19
      // Predicated region
      $region71: #{tpu_custom_call.1} parent=5 // pred_check
        %p321 = pneg %p320
      $region72: #{tpu_custom_call.1} parent=5 // pred_check_branch
        %323 = sbr.rel (%p321) target = $region74
      $region73: #{tpu_custom_call.1} parent=5 // pred_region
        %s324 = ssub.s32 %s19, 2
        // Predicated region
        $region75: #{tpu_custom_call.1} parent=73 // pred_check
          %p325 = pneg %p130
        $region76: #{tpu_custom_call.1} parent=73 // pred_check_branch
          %327 = sbr.rel (%p325) target = $region78
        $region77: #{tpu_custom_call.1} parent=73 // pred_region
          %s328 = sand.u32 %s115, 1
          %s329 = scalar_lea.sflag [#allocation8], %s328
          %s330 = sand.u32 %s115, 1
          %s331 = smul.addr %s330, 8
          %s332 = scalar_lea.vmem [#allocation9], %s331
          %333 = dma.done %s329, 128
        $region78: #{tpu_custom_call.1} parent=73 // pred_fallthru
          _
      $region74: #{tpu_custom_call.1} parent=5 // pred_fallthru
        _
    $region6: #{tpu_custom_call.1} parent=1 // loop_footer
      %s23 = sadd.s32 1, %s19
    $region7: #{tpu_custom_call.1} parent=1 // loop_footer_branch
      %18 = sbr.rel target = $region3
    $region8: #{tpu_custom_call.1} parent=1 // loop_exit
      _
    %334 = vsyncpa [#allocation7], 1
    %s335 = scalar_lea.sflag [#allocation7], 1
    %336 = vsyncpa %s335, 1
    %337 = vsyncpa [#allocation8], 1
    %s338 = scalar_lea.sflag [#allocation8], 1
    %339 = vsyncpa %s338, 1
  %340 = vsyncmov [#allocation3]
  %s341 = vpop.sfrf %340
  %p342 = scmp.eq.s32.totalorder %s341, 0
  %p343 = pneg %p342
  %345 = shalt.err (%p343)
  %s346 = scalar_lea.sflag [#allocation3], 1
  %347 = vsyncmov %s346
  %s348 = vpop.sfrf %347
  %p349 = scmp.eq.s32.totalorder %s348, 0
  %p350 = pneg %p349
  %352 = shalt.err (%p350)

</llo_original>
